<compile_context>
chip_gen: v6e
topology: v6e:2x2x1
jax: 0.10.0
libtpu: 0.0.40
codegen_flags: <defaults>
</compile_context>

<pallas_src>
import jax
import jax.numpy as jnp
from jax.experimental import pallas as pl
from jax.experimental.pallas import tpu as pltpu


def _linear_vpu_kernel(x_ref, w_ref, b_ref, o_ref):
    # x_ref: [IN, TB]  f32, batch along lanes (lane-dense loads)
    # w_ref: [IN, 1]   f32, weight column (grid-invariant, resident in VMEM)
    # b_ref: [1, 1]    f32, bias scalar in SMEM
    # o_ref: [1, TB]   f32, lane-dense output tile
    prod = x_ref[...] * w_ref[...]                  # VPU broadcast multiply
    acc = jnp.sum(prod, axis=0, keepdims=True)      # XLU sublane reduce -> [1, TB]
    o_ref[...] = (acc + b_ref[0, 0]).astype(o_ref.dtype)


def simple_model_forward(x, w, b, *, tb=128):
    """y = x @ w.T + b  (torch nn.Linear(10, 1) forward)

    x: [B, IN]  float32
    w: [OUT=1, IN] float32   (torch layout)
    b: [OUT=1]  float32
    returns: [B, OUT] float32
    """
    B, IN = x.shape
    OUT = w.shape[0]
    assert OUT == 1 and w.shape[1] == IN and b.shape == (OUT,)

    # Batch-along-lanes layout so the OUT=1 result is lane-dense.
    x_t = jnp.transpose(x)                   # [IN, B]
    w_col = jnp.transpose(w).astype(jnp.float32)   # [IN, 1]
    b_sc = b.reshape(1, 1).astype(jnp.float32)     # SMEM scalar

    if B <= tb:
        tb_eff = B                           # single block == full array dims
        bp = B
    else:
        tb_eff = tb                          # 128-lane tiles, multiple of (8,128) rule
        bp = pl.cdiv(B, tb) * tb
        if bp != B:
            x_t = jnp.pad(x_t, ((0, 0), (0, bp - B)))   # padded cols sliced off below

    nb = bp // tb_eff

    y_lanes = pl.pallas_call(
        _linear_vpu_kernel,
        out_shape=jax.ShapeDtypeStruct((1, bp), jnp.float32),
        grid=(nb,),
        in_specs=[
            pl.BlockSpec((IN, tb_eff), lambda i: (0, i)),       # x tile (pipelined)
            pl.BlockSpec((IN, 1), lambda i: (0, 0)),            # weight, grid-invariant
            pl.BlockSpec(memory_space=pltpu.MemorySpace.SMEM),  # bias scalar
        ],
        out_specs=pl.BlockSpec((1, tb_eff), lambda i: (0, i)),
        compiler_params=pltpu.CompilerParams(
            # Batch axis is embarrassingly parallel: pipelining everywhere,
            # and sharded across both TensorCores on v7x.
            dimension_semantics=("parallel",),
        ),
    )(x_t, w_col, b_sc)

    return y_lanes[0, :B].reshape(B, OUT)


if __name__ == "__main__":
    IN_FEATURES = 10
    OUT_FEATURES = 1
    BATCH = 256  # small, but >1 lane tile so the batch grid actually pipelines

    key = jax.random.PRNGKey(0)
    kx, kw, kb = jax.random.split(key, 3)

    x = jax.random.normal(kx, (BATCH, IN_FEATURES), dtype=jnp.float32)
    w = jax.random.normal(kw, (OUT_FEATURES, IN_FEATURES), dtype=jnp.float32) * 0.1
    b = jax.random.normal(kb, (OUT_FEATURES,), dtype=jnp.float32) * 0.1

    y = simple_model_forward(x, w, b)
    y = jax.block_until_ready(y)

    # Cross-check against plain JAX reference (same math as torch Linear).
    y_ref = x @ w.T + b
    assert y.shape == (BATCH, OUT_FEATURES)
    assert jnp.allclose(y, y_ref, atol=1e-5, rtol=1e-5)

    print("KERNEL_OK")
</pallas_src>

<mosaic_0001>
module attributes {stable_mosaic.version = 11 : i64} {
  func.func @_linear_vpu_kernel(%arg0: i32, %arg1: memref<10x128xf32, #tpu.memory_space<vmem>>, %arg2: memref<10x1xf32, #tpu.memory_space<vmem>>, %arg3: memref<1x1xf32, #tpu.memory_space<smem>>, %arg4: memref<1x128xf32, #tpu.memory_space<vmem>>) attributes {dimension_semantics = [#tpu.dimension_semantics<parallel>], iteration_bounds = array<i64: 2>, scalar_prefetch = 0 : i64, scratch_operands = 0 : i64, tpu.core_type = #tpu.core_type<tc>, window_params = [{transform_indices = @transform_0, window_bounds = array<i64: 10, 128>}, {pipeline_mode = #tpu.pipeline_mode<synchronous>, transform_indices = @transform_1, window_bounds = array<i64: 10, 1>}, {transform_indices = @transform_2, window_bounds = array<i64: 1, 1>}, {transform_indices = @transform_3, window_bounds = array<i64: 1, 128>}]} {
    %c0 = arith.constant 0 : index
    %c0_0 = arith.constant 0 : index
    %0 = vector.load %arg1[%c0, %c0_0] : memref<10x128xf32, #tpu.memory_space<vmem>>, vector<10x128xf32>
    %c0_1 = arith.constant 0 : index
    %c0_2 = arith.constant 0 : index
    %1 = vector.load %arg2[%c0_1, %c0_2] : memref<10x1xf32, #tpu.memory_space<vmem>>, vector<10x1xf32>
    %2 = vector.broadcast %1 : vector<10x1xf32> to vector<10x128xf32>
    %3 = arith.mulf %0, %2 : vector<10x128xf32>
    %cst = arith.constant dense<0.000000e+00> : vector<128xf32>
    %4 = vector.multi_reduction <add>, %3, %cst [0] : vector<10x128xf32> to vector<128xf32>
    %5 = vector.shape_cast %4 : vector<128xf32> to vector<1x128xf32>
    %c0_3 = arith.constant 0 : index
    %c0_4 = arith.constant 0 : index
    %6 = memref.load %arg3[%c0_3, %c0_4] : memref<1x1xf32, #tpu.memory_space<smem>>
    %7 = vector.broadcast %6 : f32 to vector<1x128xf32>
    %8 = arith.addf %5, %7 : vector<1x128xf32>
    %c0_5 = arith.constant 0 : index
    %c0_6 = arith.constant 0 : index
    %9 = vector.load %arg4[%c0_5, %c0_6] : memref<1x128xf32, #tpu.memory_space<vmem>>, vector<1x128xf32>
    tpu.vector_store %arg4[%c0_5, %c0_6], %8 {strides = array<i32>} : memref<1x128xf32, #tpu.memory_space<vmem>>, vector<1x128xf32>,
    return
  }
  func.func @transform_0(%arg0: i32) -> (i32, i32) {
    %c0_i32 = arith.constant 0 : i32
    %c0_i32_0 = arith.constant 0 : i32
    return %c0_i32, %arg0 : i32, i32
  }
  func.func @transform_1(%arg0: i32) -> (i32, i32) {
    %c0_i32 = arith.constant 0 : i32
    %c0_i32_0 = arith.constant 0 : i32
    %c0_i32_1 = arith.constant 0 : i32
    return %c0_i32, %c0_i32_0 : i32, i32
  }
  func.func @transform_2(%arg0: i32) -> (i32, i32) {
    %c0_i32 = arith.constant 0 : i32
    %c0_i32_0 = arith.constant 0 : i32
    %c0_i32_1 = arith.constant 0 : i32
    return %c0_i32, %c0_i32_0 : i32, i32
  }
  func.func @transform_3(%arg0: i32) -> (i32, i32) {
    %c0_i32 = arith.constant 0 : i32
    %c0_i32_0 = arith.constant 0 : i32
    return %c0_i32, %arg0 : i32, i32
  }
}

</mosaic_0001>

<llo_original>
// kernel: tpu_custom_call.1
$region0: #{tpu_custom_call.1}
  #allocation0 [shape = 'u32[]', space=smem, size = 0x4, offset = 0x4, fixed_abs, tag = 'smem constant byte address 0x4 - core index']
  #allocation1 [shape = 'u32[144,128]{1,0:T(1,128)}', space=vmem, size = 0x12000, scoped, tag = 'internal scratch']
  #allocation2 [shape = 'f32[1,1]{1,0:T(1,128)S(6)}', space=smem, size = 0x200, scoped, tag = 'scoped memory for tpu_custom_call.1']
  %s0 = inlined_call_operand.hbm [shape: f32[10,256], index: 0, kind: input, shape index: {}]
  %s1 = inlined_call_operand.vmem [shape: f32[10,1], index: 1, kind: input, shape index: {}]
  %s2 = inlined_call_operand.<no memory space> [shape: f32[1,1], index: 2, kind: input, shape index: {}]
  %s3 = inlined_call_operand.hbm [shape: f32[1,256], index: 3, kind: output, shape index: {}]
  %s4 = sld [smem:[#allocation0]]
  $region49: #{tpu_custom_call.1} parent=0
    _
  %s6 = ssub.s32 1, %s4
  %s7 = scalar_select 0, %s6, %s4
  %8 = sst [smem:[#allocation2]] %s2
  $region1: #{tpu_custom_call.1} parent=0
    #allocation3 [shape = 'u8[16384]{0}', space=vmem, size = 0x4000, scoped, tag = 'input window, operand 0']
    #allocation4 [shape = 's32[2]{0}', space=sflag, size = 0x8, scoped, tag = 'scoped memory for tpu_custom_call.1']
    #allocation5 [shape = 's32[2]{0}', space=sflag, size = 0x8, scoped, tag = 'scoped memory for tpu_custom_call.1']
    #allocation6 [shape = 'u8[1024]{0}', space=vmem, size = 0x400, scoped, tag = 'output window, operand 0']
    %9 = vsyncpa [#allocation4], 0
    %s10 = scalar_lea.sflag [#allocation4], 1
    %11 = vsyncpa %s10, 0
    %12 = vsyncpa [#allocation5], 0
    %s13 = scalar_lea.sflag [#allocation5], 1
    %14 = vsyncpa %s13, 0
    loop: start=0, step=1, limit=4
    $region2: #{tpu_custom_call.1} parent=1 // loop_pre_header
      _
    $region3: #{tpu_custom_call.1} parent=1 // loop_header
      %s16 = sphi 0, %s20
      %p17 = scmp.ge.s32.totalorder %s16, 4
      %s26 = sphi 0, %s28
      %s29 = sphi 0, %s26
      %s30 = sphi 0, %s29
      %s46 = sphi 0, %s30
      %s50 = sphi 0, %s50
      %s52 = sphi 0, %s50
      %s53 = sphi 0, %s52
      %s67 = sphi 0, %s53
      %s71 = sphi 0, %s71
      %s73 = sphi 0, %s71
      %s74 = sphi 0, %s73
      %s88 = sphi 0, %s74
      %s94 = sphi 0, %s96
      %s97 = sphi 0, %s94
      %s98 = sphi 0, %s97
      %s114 = sphi 0, %s98
    $region4: #{tpu_custom_call.1} parent=1 // loop_header_branch
      %19 = sbr.rel (%p17) target = $region8
    $region5: #{tpu_custom_call.1} parent=1 // loop_body
      %s21 = ssub.s32 %s16, 1
      %s22 = ssub.s32 %s16, 2
      %s23 = sadd.s32 %s16, 1
      %s24 = ssub.s32 %s16, %s23
      %p25 = scmp.eq.s32.totalorder %s24, 0
      %s27 = sadd.s32 %s26, 1
      %s28 = scalar_select %p25, %s26, %s27
      %p31 = pneg %p25
      %p32 = scmp.eq.s32.totalorder %s16, 1
      %p33 = por %p31, %p32
      %p34 = scmp.ne.s32.totalorder %s26, %s29
      %p35 = scmp.eq.s32.totalorder %s16, 0
      %p36 = por %p34, %p35
      %p37 = scmp.ne.s32.totalorder %s26, %s29
      %p38 = scmp.eq.s32.totalorder %s21, 1
      %p39 = por %p37, %p38
      %p40 = scmp.ne.s32.totalorder %s29, %s30
      %p41 = scmp.eq.s32.totalorder %s21, 0
      %p42 = por %p40, %p41
      %p43 = scmp.ne.s32.totalorder %s29, %s30
      %p44 = scmp.eq.s32.totalorder %s22, 1
      %p45 = por %p43, %p44
      %p47 = scmp.ne.s32.totalorder %s30, %s46
      %p48 = scmp.eq.s32.totalorder %s22, 0
      %p49 = por %p47, %p48
      %s51 = sadd.s32 %s50, 1
      %p54 = scmp.eq.s32.totalorder %s16, 1
      %p55 = scmp.ne.s32.totalorder %s50, %s52
      %p56 = scmp.eq.s32.totalorder %s16, 0
      %p57 = por %p55, %p56
      %p58 = scmp.ne.s32.totalorder %s50, %s52
      %p59 = scmp.eq.s32.totalorder %s21, 1
      %p60 = por %p58, %p59
      %p61 = scmp.ne.s32.totalorder %s52, %s53
      %p62 = scmp.eq.s32.totalorder %s21, 0
      %p63 = por %p61, %p62
      %p64 = scmp.ne.s32.totalorder %s52, %s53
      %p65 = scmp.eq.s32.totalorder %s22, 1
      %p66 = por %p64, %p65
      %p68 = scmp.ne.s32.totalorder %s53, %s67
      %p69 = scmp.eq.s32.totalorder %s22, 0
      %p70 = por %p68, %p69
      %s72 = sadd.s32 %s71, 1
      %p75 = scmp.eq.s32.totalorder %s16, 1
      %p76 = scmp.ne.s32.totalorder %s71, %s73
      %p77 = scmp.eq.s32.totalorder %s16, 0
      %p78 = por %p76, %p77
      %p79 = scmp.ne.s32.totalorder %s71, %s73
      %p80 = scmp.eq.s32.totalorder %s21, 1
      %p81 = por %p79, %p80
      %p82 = scmp.ne.s32.totalorder %s73, %s74
      %p83 = scmp.eq.s32.totalorder %s21, 0
      %p84 = por %p82, %p83
      %p85 = scmp.ne.s32.totalorder %s73, %s74
      %p86 = scmp.eq.s32.totalorder %s22, 1
      %p87 = por %p85, %p86
      %p89 = scmp.ne.s32.totalorder %s74, %s88
      %p90 = scmp.eq.s32.totalorder %s22, 0
      %p91 = por %p89, %p90
      %s92 = ssub.s32 %s16, %s23
      %p93 = scmp.eq.s32.totalorder %s92, 0
      %s95 = sadd.s32 %s94, 1
      %s96 = scalar_select %p93, %s94, %s95
      %p99 = pneg %p93
      %p100 = scmp.eq.s32.totalorder %s16, 1
      %p101 = por %p99, %p100
      %p102 = scmp.ne.s32.totalorder %s94, %s97
      %p103 = scmp.eq.s32.totalorder %s16, 0
      %p104 = por %p102, %p103
      %p105 = scmp.ne.s32.totalorder %s94, %s97
      %p106 = scmp.eq.s32.totalorder %s21, 1
      %p107 = por %p105, %p106
      %p108 = scmp.ne.s32.totalorder %s97, %s98
      %p109 = scmp.eq.s32.totalorder %s21, 0
      %p110 = por %p108, %p109
      %p111 = scmp.ne.s32.totalorder %s97, %s98
      %p112 = scmp.eq.s32.totalorder %s22, 1
      %p113 = por %p111, %p112
      %p115 = scmp.ne.s32.totalorder %s98, %s114
      %p116 = scmp.eq.s32.totalorder %s22, 0
      %p117 = por %p115, %p116
      %p118 = scmp.le.s32.totalorder 1, %s16
      %p119 = scmp.lt.s32.totalorder %s16, 3
      %p120 = pnand %p118, %p119
      %p121 = pneg %p120
      // Predicated region
      $region9: #{tpu_custom_call.1} parent=5 // pred_check
        _
      $region10: #{tpu_custom_call.1} parent=5 // pred_check_branch
        %123 = sbr.rel (%p120) target = $region12
      $region11: #{tpu_custom_call.1} parent=5 // pred_region
        %s124 = ssub.s32 %s16, 1
        // Predicated region
        $region13: #{tpu_custom_call.1} parent=11 // pred_check
          %p125 = pneg %p63
        $region14: #{tpu_custom_call.1} parent=11 // pred_check_branch
          %127 = sbr.rel (%p125) target = $region16
        $region15: #{tpu_custom_call.1} parent=11 // pred_region
          _
        $region16: #{tpu_custom_call.1} parent=11 // pred_fallthru
          _
        // Predicated region
        $region17: #{tpu_custom_call.1} parent=11 // pred_check
          %p128 = pneg %p84
        $region18: #{tpu_custom_call.1} parent=11 // pred_check_branch
          %130 = sbr.rel (%p128) target = $region20
        $region19: #{tpu_custom_call.1} parent=11 // pred_region
          _
        $region20: #{tpu_custom_call.1} parent=11 // pred_fallthru
          _
      $region12: #{tpu_custom_call.1} parent=5 // pred_fallthru
        _
      %p131 = scmp.lt.s32.totalorder %s16, 2
      // Predicated region
      $region21: #{tpu_custom_call.1} parent=5 // pred_check
        %p132 = pneg %p131
      $region22: #{tpu_custom_call.1} parent=5 // pred_check_branch
        %134 = sbr.rel (%p132) target = $region24
      $region23: #{tpu_custom_call.1} parent=5 // pred_region
        // Predicated region
        $region25: #{tpu_custom_call.1} parent=23 // pred_check
          %p135 = pneg %p36
        $region26: #{tpu_custom_call.1} parent=23 // pred_check_branch
          %137 = sbr.rel (%p135) target = $region28
        $region27: #{tpu_custom_call.1} parent=23 // pred_region
          %s138 = sand.u32 %s26, 1
          %s139 = scalar_lea.sflag [#allocation4], %s138
          %s140 = sand.u32 %s26, 1
          %s141 = smul.addr %s140, 16
          %s142 = scalar_lea.vmem [#allocation3], %s141
          %s144 = ssub.s32 256, 256
          %145 = vsyncadd %s139, %s144
          %s146 = smul.addr %s16, 128
          %s147 = scalar_lea.hbm %s0, %s146
          %s148 = sshll.u32 %s142, 4
          %s149 = int_to_ptr.vmem [resolvable:$true] %s148
          %154 = dma.hbm_to_vmem [thread:$0]  %s147, 256, %s149, %s139, 256, 128, 8
        $region28: #{tpu_custom_call.1} parent=23 // pred_fallthru
          _
      $region24: #{tpu_custom_call.1} parent=5 // pred_fallthru
        _
      %p155 = scmp.le.s32.totalorder 1, %s16
      %p156 = scmp.lt.s32.totalorder %s16, 3
      %p157 = pnand %p155, %p156
      %p158 = pneg %p157
      // Predicated region
      $region29: #{tpu_custom_call.1} parent=5 // pred_check
        _
      $region30: #{tpu_custom_call.1} parent=5 // pred_check_branch
        %160 = sbr.rel (%p157) target = $region32
      $region31: #{tpu_custom_call.1} parent=5 // pred_region
        %s161 = ssub.s32 %s16, 1
        %s162 = sand.u32 %s29, 1
        %s163 = scalar_lea.sflag [#allocation4], %s162
        %s164 = sand.u32 %s29, 1
        %s165 = smul.addr %s164, 16
        %s166 = scalar_lea.vmem [#allocation3], %s165
        // Predicated region
        $region33: #{tpu_custom_call.1} parent=31 // pred_check
          %p167 = pneg %p42
        $region34: #{tpu_custom_call.1} parent=31 // pred_check_branch
          %169 = sbr.rel (%p167) target = $region36
        $region35: #{tpu_custom_call.1} parent=31 // pred_region
          %170 = dma.done %s163, 256
        $region36: #{tpu_custom_call.1} parent=31 // pred_fallthru
          _
        %s171 = sand.u32 %s29, 1
        %s172 = scalar_lea.sflag [#allocation4], %s171
        %s173 = sand.u32 %s29, 1
        %s174 = smul.addr %s173, 16
        %s175 = scalar_lea.vmem [#allocation3], %s174
        %p176 = pneg %p42
        %p177 = pneg %p39
        %p178 = pneg %p63
        %p179 = pneg %p60
        %p180 = pneg %p84
        %p181 = pneg %p81
        %p182 = pneg %p110
        %p183 = pneg %p107
        %s184 = sand.u32 %s97, 1
        %s185 = scalar_lea.sflag [#allocation5], %s184
        %s186 = sand.u32 %s97, 1
        %s187 = scalar_lea.vmem [#allocation6], %s186
        %v188 = vld [vmem:[%s166] sm:$0xff]
        %v189 = vld [vmem:[%s166 + $0x8] sm:$0x3]
        %v190 = vld [vmem:[%s1] sm:$0xff]
        %v191 = vld [vmem:[%s1 + $0x8] sm:$0x3]
        %193 = vset.pattern.permute.xlu0 0
        %194 = vperm.xlu0 %193, %v190
        %v195 = vpop.permute.xlu0 %194
        %198 = vset.pattern.permute.xlu0 0
        %199 = vperm.xlu0 %198, %v191
        %v200 = vpop.permute.xlu0 %199
        %v202 = vmul.f32 %v188, %v195
        %v203 = vmul.f32 %v189, %v200
        %vm204 = vcmask 1041408
        %v205 = vsel %vm204, %v203, 0.0
        %v206 = vadd.f32 %v202, %v205
        %v207 = vrot.slane %v206, 4
        %v208 = vadd.f32 %v206, %v207
        %v209 = vrot.slane %v208, 2
        %v210 = vadd.f32 %v208, %v209
        %v211 = vrot.slane %v210, 1
        %v212 = vadd.f32 %v210, %v211
        %s213 = sld [smem:[#allocation2]]
        %v214 = vstv %s213
        %v215 = vadd.f32 %v212, %v214
        %216 = vst [vmem:[%s187] sm:$0x1] %v215
        %s217 = sand.u32 %s97, 1
        %s218 = scalar_lea.sflag [#allocation5], %s217
        %s219 = sand.u32 %s97, 1
        %s220 = scalar_lea.vmem [#allocation6], %s219
        // Predicated region
        $region37: #{tpu_custom_call.1} parent=31 // pred_check
          %p221 = pneg %p107
        $region38: #{tpu_custom_call.1} parent=31 // pred_check_branch
          %223 = sbr.rel (%p221) target = $region40
        $region39: #{tpu_custom_call.1} parent=31 // pred_region
          %s225 = ssub.s32 16, 16
          %226 = vsyncadd %s218, %s225
          %s227 = smul.addr %s21, 16
          %s228 = scalar_lea.hbm %s3, %s227
          %s230 = sshll.u32 %s220, 4
          %s231 = int_to_ptr.vmem [resolvable:$true] %s230
          %233 = dma.vmem_to_hbm [thread:$0]  %s231, 16, %s228, %s218
        $region40: #{tpu_custom_call.1} parent=31 // pred_fallthru
          _
      $region32: #{tpu_custom_call.1} parent=5 // pred_fallthru
        _
      %p234 = scmp.le.s32.totalorder 2, %s16
      // Predicated region
      $region41: #{tpu_custom_call.1} parent=5 // pred_check
        %p235 = pneg %p234
      $region42: #{tpu_custom_call.1} parent=5 // pred_check_branch
        %237 = sbr.rel (%p235) target = $region44
      $region43: #{tpu_custom_call.1} parent=5 // pred_region
        %s238 = ssub.s32 %s16, 2
        // Predicated region
        $region45: #{tpu_custom_call.1} parent=43 // pred_check
          %p239 = pneg %p113
        $region46: #{tpu_custom_call.1} parent=43 // pred_check_branch
          %241 = sbr.rel (%p239) target = $region48
        $region47: #{tpu_custom_call.1} parent=43 // pred_region
          %s242 = sand.u32 %s98, 1
          %s243 = scalar_lea.sflag [#allocation5], %s242
          %s244 = sand.u32 %s98, 1
          %s245 = scalar_lea.vmem [#allocation6], %s244
          %246 = dma.done %s243, 16
        $region48: #{tpu_custom_call.1} parent=43 // pred_fallthru
          _
      $region44: #{tpu_custom_call.1} parent=5 // pred_fallthru
        _
    $region6: #{tpu_custom_call.1} parent=1 // loop_footer
      %s20 = sadd.s32 1, %s16
    $region7: #{tpu_custom_call.1} parent=1 // loop_footer_branch
      %15 = sbr.rel target = $region3
    $region8: #{tpu_custom_call.1} parent=1 // loop_exit
      _
    %247 = vsyncpa [#allocation4], 1
    %s248 = scalar_lea.sflag [#allocation4], 1
    %249 = vsyncpa %s248, 1
    %250 = vsyncpa [#allocation5], 1
    %s251 = scalar_lea.sflag [#allocation5], 1
    %252 = vsyncpa %s251, 1

</llo_original>
